<compile_context>
chip_gen: v7x
topology: tpu7x:2x2x1
jax: 0.10.0
libtpu: 0.0.40
codegen_flags: <defaults>
</compile_context>

<pallas_src>
import numpy as np
import jax
import jax.numpy as jnp
from jax.experimental import pallas as pl
from jax.experimental.pallas import tpu as pltpu


def _round_up(x, m):
    return ((x + m - 1) // m) * m


def _cdiv(a, b):
    return -(-a // b)


def _pick_tile_t(n_frames, batch, max_tile_t=256):
    """Frame-tile size.  >=128 (lane-dense transposed-output stores) when the
    frame count is large; for small frame counts a single full-dim tile rounded
    to 16 rows (bf16 sublane packing).  Prefers >= 4 total grid steps so v7x's
    two TensorCores each get >= 2 pipelined steps."""
    if n_frames < 128:
        return max(16, _round_up(n_frames, 16))
    tile = max(128, (int(max_tile_t) // 128) * 128)
    while tile > 128 and batch * _cdiv(n_frames, tile) < 4:
        tile //= 2
    return tile


def _make_spec_kernel(r, k_pad, k_half, take_sqrt):
    """r = n_fft // hop.  Basis columns: [cos bins 0..k_half-1 (lane-padded to
    k_pad) | -sin bins 0..k_half-1 (lane-padded)], with the identically-zero
    sin column of bin 0 repurposed for the real-valued Nyquist bin."""

    def _epilogue(acc, out_ref):
        # acc: (tile_t, 2*k_pad) f32.  Square slices of the projection (no
        # full-width temp), transpose on the XLU (hidden under the MXU) and
        # store directly in (bins, frames) layout.
        sqc = acc[:, :k_pad]
        sqc = sqc * sqc
        sqs = acc[:, k_pad:]
        sqs = sqs * sqs
        sqc_t = jnp.transpose(sqc)          # (k_pad, tile_t)
        sqs_t = jnp.transpose(sqs)
        pow_t = sqc_t + sqs_t
        dc_t = sqc_t[0:1, :]                # DC power: cos term only
        ny_t = sqs_t[0:1, :]                # Nyquist power (repurposed sin col 0)
        if take_sqrt:                       # power == 1
            pow_t = jnp.sqrt(pow_t)
            dc_t = jnp.sqrt(dc_t)
            ny_t = jnp.sqrt(ny_t)
        odt = out_ref.dtype
        out_ref[0, 0:k_half, :] = pow_t[0:k_half, :].astype(odt)
        out_ref[0, 0:1, :] = dc_t.astype(odt)                       # fix bin 0
        out_ref[0, k_half:k_half + 1, :] = ny_t.astype(odt)         # Nyquist bin

    if r == 1:
        def kernel(a0_ref, basis_ref, out_ref):
            acc = jnp.dot(a0_ref[0], basis_ref[0],
                          preferred_element_type=jnp.float32)
            _epilogue(acc, out_ref)
    else:
        def kernel(a0_ref, a1_ref, basis_ref, out_ref, stage_ref):
            tile_t = a0_ref.shape[1]
            a0 = a0_ref[0]                                   # (tile_t, hop)
            # Stage the block tile + next-tile tail contiguously so the shifted
            # (overlapping) chunk windows are plain static ref slices.
            stage_ref[0:tile_t, :] = a0
            stage_ref[tile_t:, :] = a1_ref[0]                # (r_pad, hop)
            acc = jnp.dot(a0, basis_ref[0], preferred_element_type=jnp.float32)
            for c in range(1, r):
                lhs = stage_ref[c:c + tile_t, :]             # frame chunk c
                acc = acc + jnp.dot(lhs, basis_ref[c],
                                    preferred_element_type=jnp.float32)
            _epilogue(acc, out_ref)
    return kernel


def _power_spec_pallas(blocks, basis, *, r, r_pad, hop, k_pad, k_half, n_bins,
                       n_frames, tile_t, n_tiles, take_sqrt, out_dtype):
    """blocks: (B, NBP, hop) hop-sized audio blocks (NBP >= n_tiles*tile_t +
    r_pad); basis: (r, hop, 2*k_pad).  Returns (B, n_bins, T_out) with
    T_out == n_frames when the frame tile is lane-dense."""
    B = blocks.shape[0]

    # Output frame axis: exact (partial last block masked by Pallas) when the
    # tile is lane-dense; otherwise padded to one full tile and sliced by the
    # caller (tiny, only happens for n_frames < 128).
    out_T = n_frames if tile_t % 128 == 0 else n_tiles * tile_t

    in_specs = [pl.BlockSpec((1, tile_t, hop), lambda b, i: (b, i, 0))]
    operands = [blocks]
    scratch_shapes = []
    if r > 1:
        step = tile_t // r_pad
        in_specs.append(
            pl.BlockSpec((1, r_pad, hop), lambda b, i: (b, (i + 1) * step, 0)))
        operands.append(blocks)
        scratch_shapes.append(pltpu.VMEM((tile_t + r_pad, hop), blocks.dtype))

    # Resident DFT basis: constant index_map (fetched once); single-buffered to
    # halve its VMEM footprint (matters most on v7x's 64 MiB VMEM).
    try:
        basis_spec = pl.BlockSpec(basis.shape, lambda b, i: (0, 0, 0),
                                  pipeline_mode=pl.Buffered(1))
    except (TypeError, AttributeError):
        basis_spec = pl.BlockSpec(basis.shape, lambda b, i: (0, 0, 0))
    in_specs.append(basis_spec)
    operands.append(basis)

    # Right-sized VMEM request (never the full physical VMEM): resident basis +
    # double-buffered streams + f32 temporaries, with margin.
    isz = blocks.dtype.itemsize
    osz = jnp.dtype(out_dtype).itemsize
    need = (basis.size * basis.dtype.itemsize
            + 2 * tile_t * hop * isz
            + (2 * r_pad * hop * isz + (tile_t + r_pad) * hop * isz if r > 1 else 0)
            + 2 * n_bins * tile_t * osz
            + 2 * tile_t * 2 * k_pad * 4        # f32 accumulator + slack
            + 3 * tile_t * k_pad * 4)           # squares / transposed tiles
    try:
        cap = int(pltpu.get_tpu_info().vmem_capacity_bytes)
    except Exception:
        cap = 128 * 1024 * 1024
    vmem_limit = int(min(int(0.85 * cap),
                         max(32 * 1024 * 1024, int(1.3 * need))))

    out = pl.pallas_call(
        _make_spec_kernel(r, k_pad, k_half, take_sqrt),
        out_shape=jax.ShapeDtypeStruct((B, n_bins, out_T), out_dtype),
        grid=(B, n_tiles),
        in_specs=in_specs,
        out_specs=pl.BlockSpec((1, n_bins, tile_t), lambda b, i: (b, 0, i)),
        scratch_shapes=scratch_shapes,
        compiler_params=pltpu.CompilerParams(
            dimension_semantics=("parallel", "parallel"),
            vmem_limit_bytes=vmem_limit),
    )(*operands)

    if out_T != n_frames:
        out = out[:, :, :n_frames]
    return out


class Spec:
    """JAX/Pallas equivalent of diffsynth.spectral.Spec (rectangular window,
    center=False).  No learned parameters; the real-DFT basis is deterministic."""

    def __init__(self, n_fft=2048, hop_length=1024, power=2, pad_end=True,
                 center=False, compute_dtype=jnp.bfloat16,
                 out_dtype=jnp.float32, max_tile_t=256):
        if center:
            raise NotImplementedError("only center=False is supported (module default)")
        if power not in (1, 2):
            raise ValueError("power must be 1 or 2")
        if n_fft % 2 != 0:
            raise ValueError("n_fft must be even")
        self.n_fft = n_fft
        self.hop_length = hop_length
        self.power = power
        self.pad_end = pad_end
        self.center = center
        self.compute_dtype = compute_dtype   # bf16 -> MXU peak; f32 for full precision
        self.out_dtype = out_dtype
        self.max_tile_t = max_tile_t

        # In-kernel framing needs hop | n_fft (true for the default 1024 | 2048).
        self.fused = (n_fft % hop_length == 0) and (n_fft // hop_length <= 256)
        if self.fused:
            self.r = n_fft // hop_length
            self.hop_k = hop_length
        else:
            self.r = 1
            self.hop_k = n_fft
        self.r_pad = 0
        if self.r > 1:
            self.r_pad = max(16, int(pl.next_power_of_2(self.r - 1)))

        n_bins = n_fft // 2 + 1
        k_half = n_fft // 2                      # bins 0..k_half-1 via the matmul
        k_pad = _round_up(k_half, 128)           # lane-aligned column count
        self.n_bins, self.k_half, self.k_pad = n_bins, k_half, k_pad

        n = np.arange(n_fft, dtype=np.float64)[:, None]
        k = np.arange(k_half, dtype=np.float64)[None, :]
        ang = 2.0 * np.pi * n * k / n_fft
        basis = np.zeros((n_fft, 2 * k_pad), np.float32)
        basis[:, :k_half] = np.cos(ang)
        basis[:, k_pad:k_pad + k_half] = -np.sin(ang)  # sign irrelevant for power
        # The sin column of bin 0 is identically zero -> repurpose it for the
        # purely-real Nyquist bin, so no MXU columns are wasted.
        basis[:, k_pad] = np.cos(np.pi * np.arange(n_fft, dtype=np.float64))
        basis = basis.reshape(self.r, self.hop_k, 2 * k_pad)
        self.basis = jnp.asarray(basis, dtype=compute_dtype)

    def __call__(self, audio):
        # audio: (B, L) float
        B, L = audio.shape
        n_fft, hop = self.n_fft, self.hop_length
        if self.pad_end:
            remainder = (L - n_fft) % hop
            pad_end_amt = 0 if remainder == 0 else hop - remainder
        else:
            pad_end_amt = 0
        L1 = L + pad_end_amt
        if L1 < n_fft:
            raise ValueError(f"audio length {L1} shorter than n_fft={n_fft}")
        T = 1 + (L1 - n_fft) // hop

        tile_t = _pick_tile_t(T, B, self.max_tile_t)
        if self.r > 1:
            tile_t = _round_up(tile_t, self.r_pad)
        n_tiles = _cdiv(T, tile_t)

        audio = audio.astype(self.compute_dtype)   # cast before any pad/copy
        if self.fused:
            # One pad covers pad_end + frame-tile padding + next-tile tail rows;
            # the overlapped frames themselves are assembled inside the kernel.
            nbp = n_tiles * tile_t + (self.r_pad if self.r > 1 else 0)
            total = nbp * self.hop_k
            if total >= L:
                audio = jnp.pad(audio, ((0, 0), (0, total - L)))
            else:
                audio = audio[:, :total]
            blocks = audio.reshape(B, nbp, self.hop_k)
        else:
            # TODO(synk): hop_length not dividing n_fft falls back to an XLA
            #             gather that materialises the overlapped frames array.
            if pad_end_amt:
                audio = jnp.pad(audio, ((0, 0), (0, pad_end_amt)))
            rows = n_tiles * tile_t
            t_idx = np.minimum(np.arange(rows), T - 1)
            idx = t_idx[:, None] * hop + np.arange(n_fft)[None, :]
            blocks = audio[:, idx]                       # (B, rows, n_fft)

        spec = _power_spec_pallas(
            blocks, self.basis, r=self.r, r_pad=self.r_pad, hop=self.hop_k,
            k_pad=self.k_pad, k_half=self.k_half, n_bins=self.n_bins,
            n_frames=T, tile_t=tile_t, n_tiles=n_tiles,
            take_sqrt=(self.power == 1), out_dtype=self.out_dtype)
        return spec     # (B, n_bins, T), same layout as torch.stft


def _host_reference(audio_f32, spec_mod):
    """Host float64 references: (a) matched-precision (operands rounded to the
    kernel's compute dtype, exact accumulation), (b) full-precision rfft."""
    n_fft, hop = spec_mod.n_fft, spec_mod.hop_length
    B, L = audio_f32.shape
    if spec_mod.pad_end:
        remainder = (L - n_fft) % hop
        pad = 0 if remainder == 0 else hop - remainder
        audio_f32 = np.pad(audio_f32, ((0, 0), (0, pad)))
    L1 = audio_f32.shape[1]
    T = 1 + (L1 - n_fft) // hop
    idx = np.arange(T)[:, None] * hop + np.arange(n_fft)[None, :]
    frames = audio_f32[:, idx].astype(np.float64)                    # (B, T, n_fft)

    # (a) matched precision: same rounded operands, f64 accumulation.
    fq = np.asarray(
        jnp.asarray(frames.astype(np.float32), dtype=spec_mod.compute_dtype)
        .astype(jnp.float32)).astype(np.float64)
    basis = np.asarray(spec_mod.basis.astype(jnp.float32)).astype(np.float64)
    basis = basis.reshape(spec_mod.r * spec_mod.hop_k, -1)           # (n_fft, 2*k_pad)
    proj = fq @ basis
    k_pad, k_half = spec_mod.k_pad, spec_mod.k_half
    pc, ps = proj[..., :k_pad], proj[..., k_pad:]
    p = pc ** 2 + ps ** 2
    p[..., 0] = pc[..., 0] ** 2                                      # DC (cos only)
    matched = np.concatenate([p[..., :k_half], ps[..., 0:1] ** 2], axis=-1)

    # (b) ground truth from the full-precision rfft.
    exact = np.abs(np.fft.rfft(frames, axis=-1)) ** 2
    if spec_mod.power == 1:
        matched = np.sqrt(matched)
        exact = np.sqrt(exact)
    return matched.transpose(0, 2, 1), exact.transpose(0, 2, 1)      # (B, bins, T)


if __name__ == "__main__":
    key = jax.random.PRNGKey(0)

    # --- test 1: small shapes, power=2, single frame tile (T < 128 path) ------
    B, L = 2, 500
    audio = jax.random.normal(key, (B, L), dtype=jnp.float32)
    mod = Spec(n_fft=128, hop_length=64, power=2, pad_end=True, center=False)
    out = jax.block_until_ready(mod(audio))
    matched, exact = _host_reference(np.asarray(audio), mod)
    assert out.shape == matched.shape, (out.shape, matched.shape)
    np.testing.assert_allclose(np.asarray(out), matched, rtol=2e-3, atol=5e-2)
    np.testing.assert_allclose(np.asarray(out), exact, rtol=1e-1, atol=2.0)

    # --- test 2: multi-tile grid, partial last frame tile, power=1 (sqrt) -----
    key2 = jax.random.PRNGKey(0)
    B2, L2 = 1, 16700
    audio2 = jax.random.normal(key2, (B2, L2), dtype=jnp.float32)
    mod2 = Spec(n_fft=256, hop_length=128, power=1, pad_end=True, center=False)
    out2 = jax.block_until_ready(mod2(audio2))
    matched2, exact2 = _host_reference(np.asarray(audio2), mod2)
    assert out2.shape == matched2.shape, (out2.shape, matched2.shape)
    np.testing.assert_allclose(np.asarray(out2), matched2, rtol=2e-3, atol=5e-2)
    np.testing.assert_allclose(np.asarray(out2), exact2, rtol=1e-1, atol=2.0)

    print("KERNEL_OK")
</pallas_src>

<mosaic_0001>
module attributes {stable_mosaic.version = 11 : i64} {
  func.func @kernel(%arg0: i32, %arg1: i32, %arg2: memref<1x16x64xbf16, #tpu.memory_space<vmem>>, %arg3: memref<1x16x64xbf16, #tpu.memory_space<vmem>>, %arg4: memref<2x64x256xbf16, #tpu.memory_space<vmem>>, %arg5: memref<1x65x16xf32, #tpu.memory_space<vmem>>, %arg6: memref<32x64xbf16, #tpu.memory_space<vmem>>) attributes {dimension_semantics = [#tpu.dimension_semantics<parallel>, #tpu.dimension_semantics<parallel>], iteration_bounds = array<i64: 2, 1>, scalar_prefetch = 0 : i64, scratch_operands = 1 : i64, tpu.core_type = #tpu.core_type<tc>, window_params = [{transform_indices = @transform_0, window_bounds = array<i64: 1, 16, 64>}, {transform_indices = @transform_1, window_bounds = array<i64: 1, 16, 64>}, {pipeline_mode = #tpu.pipeline_mode<synchronous>, transform_indices = @transform_2, window_bounds = array<i64: 2, 64, 256>}, {transform_indices = @transform_3, window_bounds = array<i64: 1, 65, 16>}]} {
    %c0 = arith.constant 0 : index
    %c0_0 = arith.constant 0 : index
    %c0_1 = arith.constant 0 : index
    %0 = vector.load %arg2[%c0, %c0_0, %c0_1] : memref<1x16x64xbf16, #tpu.memory_space<vmem>>, vector<1x16x64xbf16>
    %1 = vector.shape_cast %0 : vector<1x16x64xbf16> to vector<16x64xbf16>
    %c0_2 = arith.constant 0 : index
    %c0_3 = arith.constant 0 : index
    %2 = vector.load %arg6[%c0_2, %c0_3] : memref<32x64xbf16, #tpu.memory_space<vmem>>, vector<16x64xbf16>
    tpu.vector_store %arg6[%c0_2, %c0_3], %1 {strides = array<i32>} : memref<32x64xbf16, #tpu.memory_space<vmem>>, vector<16x64xbf16>,
    %c0_4 = arith.constant 0 : index
    %c0_5 = arith.constant 0 : index
    %c0_6 = arith.constant 0 : index
    %3 = vector.load %arg3[%c0_4, %c0_5, %c0_6] : memref<1x16x64xbf16, #tpu.memory_space<vmem>>, vector<1x16x64xbf16>
    %4 = vector.shape_cast %3 : vector<1x16x64xbf16> to vector<16x64xbf16>
    %c16 = arith.constant 16 : index
    %c0_7 = arith.constant 0 : index
    %5 = vector.load %arg6[%c16, %c0_7] : memref<32x64xbf16, #tpu.memory_space<vmem>>, vector<16x64xbf16>
    tpu.vector_store %arg6[%c16, %c0_7], %4 {strides = array<i32>} : memref<32x64xbf16, #tpu.memory_space<vmem>>, vector<16x64xbf16>,
    %c0_8 = arith.constant 0 : index
    %c0_9 = arith.constant 0 : index
    %c0_10 = arith.constant 0 : index
    %6 = vector.load %arg4[%c0_8, %c0_9, %c0_10] : memref<2x64x256xbf16, #tpu.memory_space<vmem>>, vector<1x64x256xbf16>
    %7 = vector.shape_cast %6 : vector<1x64x256xbf16> to vector<64x256xbf16>
    %cst = arith.constant dense<0.000000e+00> : vector<16x256xf32>
    %8 = tpu.matmul %1, %7, %cst {dimension_numbers = #tpu.dot_dimension_numbers<[1], [0], [0], [1], [0, 0, 1, 1], [], []>} : vector<16x64xbf16>, vector<64x256xbf16>, vector<16x256xf32> -> vector<16x256xf32>
    %c1 = arith.constant 1 : index
    %c0_11 = arith.constant 0 : index
    %9 = vector.load %arg6[%c1, %c0_11] : memref<32x64xbf16, #tpu.memory_space<vmem>>, vector<16x64xbf16>
    %c1_12 = arith.constant 1 : index
    %c0_13 = arith.constant 0 : index
    %c0_14 = arith.constant 0 : index
    %10 = vector.load %arg4[%c1_12, %c0_13, %c0_14] : memref<2x64x256xbf16, #tpu.memory_space<vmem>>, vector<1x64x256xbf16>
    %11 = vector.shape_cast %10 : vector<1x64x256xbf16> to vector<64x256xbf16>
    %cst_15 = arith.constant dense<0.000000e+00> : vector<16x256xf32>
    %12 = tpu.matmul %9, %11, %cst_15 {dimension_numbers = #tpu.dot_dimension_numbers<[1], [0], [0], [1], [0, 0, 1, 1], [], []>} : vector<16x64xbf16>, vector<64x256xbf16>, vector<16x256xf32> -> vector<16x256xf32>
    %13 = arith.addf %8, %12 : vector<16x256xf32>
    %14 = vector.extract_strided_slice %13 {offsets = [0, 0], sizes = [16, 128], strides = [1, 1]} : vector<16x256xf32> to vector<16x128xf32>
    %15 = arith.mulf %14, %14 : vector<16x128xf32>
    %16 = vector.extract_strided_slice %13 {offsets = [0, 128], sizes = [16, 128], strides = [1, 1]} : vector<16x256xf32> to vector<16x128xf32>
    %17 = arith.mulf %16, %16 : vector<16x128xf32>
    %18 = tpu.transpose %15, [1, 0] : vector<16x128xf32> -> vector<128x16xf32>
    %19 = tpu.transpose %17, [1, 0] : vector<16x128xf32> -> vector<128x16xf32>
    %20 = arith.addf %18, %19 : vector<128x16xf32>
    %21 = vector.extract_strided_slice %18 {offsets = [0, 0], sizes = [1, 16], strides = [1, 1]} : vector<128x16xf32> to vector<1x16xf32>
    %22 = vector.extract_strided_slice %19 {offsets = [0, 0], sizes = [1, 16], strides = [1, 1]} : vector<128x16xf32> to vector<1x16xf32>
    %23 = vector.extract_strided_slice %20 {offsets = [0, 0], sizes = [64, 16], strides = [1, 1]} : vector<128x16xf32> to vector<64x16xf32>
    %c0_16 = arith.constant 0 : index
    %c0_17 = arith.constant 0 : index
    %c0_18 = arith.constant 0 : index
    %24 = vector.load %arg5[%c0_16, %c0_17, %c0_18] : memref<1x65x16xf32, #tpu.memory_space<vmem>>, vector<1x64x16xf32>
    %25 = vector.shape_cast %24 : vector<1x64x16xf32> to vector<64x16xf32>
    %26 = vector.shape_cast %23 : vector<64x16xf32> to vector<1x64x16xf32>
    tpu.vector_store %arg5[%c0_16, %c0_17, %c0_18], %26 {strides = array<i32>} : memref<1x65x16xf32, #tpu.memory_space<vmem>>, vector<1x64x16xf32>,
    %c0_19 = arith.constant 0 : index
    %c0_20 = arith.constant 0 : index
    %c0_21 = arith.constant 0 : index
    %27 = vector.load %arg5[%c0_19, %c0_20, %c0_21] : memref<1x65x16xf32, #tpu.memory_space<vmem>>, vector<1x1x16xf32>
    %28 = vector.shape_cast %27 : vector<1x1x16xf32> to vector<1x16xf32>
    %29 = vector.shape_cast %21 : vector<1x16xf32> to vector<1x1x16xf32>
    tpu.vector_store %arg5[%c0_19, %c0_20, %c0_21], %29 {strides = array<i32>} : memref<1x65x16xf32, #tpu.memory_space<vmem>>, vector<1x1x16xf32>,
    %c0_22 = arith.constant 0 : index
    %c64 = arith.constant 64 : index
    %c0_23 = arith.constant 0 : index
    %30 = vector.load %arg5[%c0_22, %c64, %c0_23] : memref<1x65x16xf32, #tpu.memory_space<vmem>>, vector<1x1x16xf32>
    %31 = vector.shape_cast %30 : vector<1x1x16xf32> to vector<1x16xf32>
    %32 = vector.shape_cast %22 : vector<1x16xf32> to vector<1x1x16xf32>
    tpu.vector_store %arg5[%c0_22, %c64, %c0_23], %32 {strides = array<i32>} : memref<1x65x16xf32, #tpu.memory_space<vmem>>, vector<1x1x16xf32>,
    return
  }
  func.func @transform_0(%arg0: i32, %arg1: i32) -> (i32, i32, i32) {
    %c0_i32 = arith.constant 0 : i32
    %c0_i32_0 = arith.constant 0 : i32
    return %arg0, %arg1, %c0_i32 : i32, i32, i32
  }
  func.func @transform_1(%arg0: i32, %arg1: i32) -> (i32, i32, i32) {
    %c1_i32 = arith.constant 1 : i32
    %0 = arith.addi %arg1, %c1_i32 : i32
    %c1_i32_0 = arith.constant 1 : i32
    %1 = arith.muli %0, %c1_i32_0 : i32
    %c0_i32 = arith.constant 0 : i32
    %c0_i32_1 = arith.constant 0 : i32
    return %arg0, %1, %c0_i32 : i32, i32, i32
  }
  func.func @transform_2(%arg0: i32, %arg1: i32) -> (i32, i32, i32) {
    %c0_i32 = arith.constant 0 : i32
    %c0_i32_0 = arith.constant 0 : i32
    %c0_i32_1 = arith.constant 0 : i32
    %c0_i32_2 = arith.constant 0 : i32
    return %c0_i32, %c0_i32_0, %c0_i32_1 : i32, i32, i32
  }
  func.func @transform_3(%arg0: i32, %arg1: i32) -> (i32, i32, i32) {
    %c0_i32 = arith.constant 0 : i32
    %c0_i32_0 = arith.constant 0 : i32
    return %arg0, %c0_i32, %arg1 : i32, i32, i32
  }
}

</mosaic_0001>

<llo_original>
// kernel: tpu_custom_call.1
$region0: #{tpu_custom_call.1}
  #allocation0 [shape = 'u32[]', space=smem, size = 0x4, offset = 0x4, fixed_abs, tag = 'smem constant byte address 0x4 - core index']
  #allocation1 [shape = 'u32[144,128]{1,0:T(1,128)}', space=vmem, size = 0x12000, scoped, tag = 'internal scratch']
  #allocation2 [shape = 'bf16[32,64]{1,0:T(16,128)(2,1)}', space=vmem, size = 0x2000, scoped, tag = 'scratch operand']
  %s0 = inlined_call_operand.hbm [shape: bf16[2,32,64], index: 0, kind: input, shape index: {}]
  %s1 = inlined_call_operand.hbm [shape: bf16[2,32,64], index: 1, kind: input, shape index: {}]
  %s2 = inlined_call_operand.hbm [shape: bf16[2,64,256], index: 2, kind: input, shape index: {}]
  %s3 = inlined_call_operand.vmem [shape: f32[2,65,16], index: 3, kind: output, shape index: {}]
  %s4 = sld [smem:[#allocation0]]
  $region57: #{tpu_custom_call.1} parent=0
    _
  %s6 = ssub.s32 1, %s4
  %s7 = scalar_select 0, %s6, %s4
  $region1: #{tpu_custom_call.1} parent=0
    #allocation3 [shape = 'u8[8192]{0}', space=vmem, size = 0x2000, scoped, tag = 'input window, operand 0']
    #allocation4 [shape = 's32[2]{0}', space=sflag, size = 0x8, scoped, tag = 'scoped memory for tpu_custom_call.1']
    #allocation5 [shape = 'u8[8192]{0}', space=vmem, size = 0x2000, scoped, tag = 'input window, operand 1']
    #allocation6 [shape = 's32[2]{0}', space=sflag, size = 0x8, scoped, tag = 'scoped memory for tpu_custom_call.1']
    #allocation7 [shape = 'u8[65536]{0}', space=vmem, size = 0x10000, scoped, tag = 'input window, operand 2, single buffered']
    %8 = vsyncpa [#allocation4], 0
    %s9 = scalar_lea.sflag [#allocation4], 1
    %10 = vsyncpa %s9, 0
    %11 = vsyncpa [#allocation6], 0
    %s12 = scalar_lea.sflag [#allocation6], 1
    %13 = vsyncpa %s12, 0
    loop: start=0, step=1, limit=4
    $region2: #{tpu_custom_call.1} parent=1 // loop_pre_header
      _
    $region3: #{tpu_custom_call.1} parent=1 // loop_header
      %s15 = sphi 0, %s19
      %p16 = scmp.ge.s32.totalorder %s15, 4
      %s22 = sphi 0, %s34
      %s23 = sphi 0, %s30
      %s24 = sphi 0, %s22
      %s25 = sphi 0, %s23
      %s26 = sphi 0, %s24
      %s27 = sphi 0, %s25
      %s39 = sphi 0, %s41
      %s42 = sphi 0, %s39
      %s43 = sphi 0, %s42
      %s59 = sphi 0, %s43
      %s69 = sphi 0, %s71
      %s72 = sphi 0, %s69
      %s73 = sphi 0, %s72
      %s89 = sphi 0, %s73
      %s93 = sphi 0, %s93
      %s95 = sphi 0, %s93
      %s96 = sphi 0, %s95
      %s110 = sphi 0, %s96
      %s118 = sphi 0, %s120
      %s121 = sphi 0, %s118
      %s122 = sphi 0, %s121
      %s138 = sphi 0, %s122
    $region4: #{tpu_custom_call.1} parent=1 // loop_header_branch
      %18 = sbr.rel (%p16) target = $region8
    $region5: #{tpu_custom_call.1} parent=1 // loop_body
      %s20 = ssub.s32 %s15, 1
      %s21 = ssub.s32 %s15, 2
      %s28 = sadd.s32 1, %s23
      %p29 = scmp.ge.s32.totalorder %s28, 1
      %s30 = scalar_select %p29, 0, %s28
      %s31 = sadd.s32 1, %s22
      %s32 = scalar_select %p29, %s31, %s22
      %p33 = scmp.ge.s32.totalorder %s32, 2
      %s34 = scalar_select %p33, 0, %s32
      %s35 = ssub.s32 %s22, %s34
      %s36 = ssub.s32 %s23, %s30
      %s37 = sor.u32 %s35, %s36
      %p38 = scmp.eq.s32.totalorder %s37, 0
      %s40 = sadd.s32 %s39, 1
      %s41 = scalar_select %p38, %s39, %s40
      %p44 = pneg %p38
      %p45 = scmp.eq.s32.totalorder %s15, 1
      %p46 = por %p44, %p45
      %p47 = scmp.ne.s32.totalorder %s39, %s42
      %p48 = scmp.eq.s32.totalorder %s15, 0
      %p49 = por %p47, %p48
      %p50 = scmp.ne.s32.totalorder %s39, %s42
      %p51 = scmp.eq.s32.totalorder %s20, 1
      %p52 = por %p50, %p51
      %p53 = scmp.ne.s32.totalorder %s42, %s43
      %p54 = scmp.eq.s32.totalorder %s20, 0
      %p55 = por %p53, %p54
      %p56 = scmp.ne.s32.totalorder %s42, %s43
      %p57 = scmp.eq.s32.totalorder %s21, 1
      %p58 = por %p56, %p57
      %p60 = scmp.ne.s32.totalorder %s43, %s59
      %p61 = scmp.eq.s32.totalorder %s21, 0
      %p62 = por %p60, %p61
      %s63 = sadd.s32 %s23, 1
      %s64 = sadd.s32 %s30, 1
      %s65 = ssub.s32 %s22, %s34
      %s66 = ssub.s32 %s63, %s64
      %s67 = sor.u32 %s65, %s66
      %p68 = scmp.eq.s32.totalorder %s67, 0
      %s70 = sadd.s32 %s69, 1
      %s71 = scalar_select %p68, %s69, %s70
      %p74 = pneg %p68
      %p75 = scmp.eq.s32.totalorder %s15, 1
      %p76 = por %p74, %p75
      %p77 = scmp.ne.s32.totalorder %s69, %s72
      %p78 = scmp.eq.s32.totalorder %s15, 0
      %p79 = por %p77, %p78
      %p80 = scmp.ne.s32.totalorder %s69, %s72
      %p81 = scmp.eq.s32.totalorder %s20, 1
      %p82 = por %p80, %p81
      %p83 = scmp.ne.s32.totalorder %s72, %s73
      %p84 = scmp.eq.s32.totalorder %s20, 0
      %p85 = por %p83, %p84
      %p86 = scmp.ne.s32.totalorder %s72, %s73
      %p87 = scmp.eq.s32.totalorder %s21, 1
      %p88 = por %p86, %p87
      %p90 = scmp.ne.s32.totalorder %s73, %s89
      %p91 = scmp.eq.s32.totalorder %s21, 0
      %p92 = por %p90, %p91
      %s94 = sadd.s32 %s93, 1
      %p97 = scmp.eq.s32.totalorder %s15, 1
      %p98 = scmp.ne.s32.totalorder %s93, %s95
      %p99 = scmp.eq.s32.totalorder %s15, 0
      %p100 = por %p98, %p99
      %p101 = scmp.ne.s32.totalorder %s93, %s95
      %p102 = scmp.eq.s32.totalorder %s20, 1
      %p103 = por %p101, %p102
      %p104 = scmp.ne.s32.totalorder %s95, %s96
      %p105 = scmp.eq.s32.totalorder %s20, 0
      %p106 = por %p104, %p105
      %p107 = scmp.ne.s32.totalorder %s95, %s96
      %p108 = scmp.eq.s32.totalorder %s21, 1
      %p109 = por %p107, %p108
      %p111 = scmp.ne.s32.totalorder %s96, %s110
      %p112 = scmp.eq.s32.totalorder %s21, 0
      %p113 = por %p111, %p112
      %s114 = ssub.s32 %s22, %s34
      %s115 = ssub.s32 %s23, %s30
      %s116 = sor.u32 %s114, %s115
      %p117 = scmp.eq.s32.totalorder %s116, 0
      %s119 = sadd.s32 %s118, 1
      %s120 = scalar_select %p117, %s118, %s119
      %p123 = pneg %p117
      %p124 = scmp.eq.s32.totalorder %s15, 1
      %p125 = por %p123, %p124
      %p126 = scmp.ne.s32.totalorder %s118, %s121
      %p127 = scmp.eq.s32.totalorder %s15, 0
      %p128 = por %p126, %p127
      %p129 = scmp.ne.s32.totalorder %s118, %s121
      %p130 = scmp.eq.s32.totalorder %s20, 1
      %p131 = por %p129, %p130
      %p132 = scmp.ne.s32.totalorder %s121, %s122
      %p133 = scmp.eq.s32.totalorder %s20, 0
      %p134 = por %p132, %p133
      %p135 = scmp.ne.s32.totalorder %s121, %s122
      %p136 = scmp.eq.s32.totalorder %s21, 1
      %p137 = por %p135, %p136
      %p139 = scmp.ne.s32.totalorder %s122, %s138
      %p140 = scmp.eq.s32.totalorder %s21, 0
      %p141 = por %p139, %p140
      %p142 = scmp.le.s32.totalorder 1, %s15
      %p143 = scmp.lt.s32.totalorder %s15, 3
      %p144 = pnand %p142, %p143
      %p145 = pneg %p144
      // Predicated region
      $region9: #{tpu_custom_call.1} parent=5 // pred_check
        _
      $region10: #{tpu_custom_call.1} parent=5 // pred_check_branch
        %147 = sbr.rel (%p144) target = $region12
      $region11: #{tpu_custom_call.1} parent=5 // pred_region
        %s148 = ssub.s32 %s15, 1
        // Predicated region
        $region13: #{tpu_custom_call.1} parent=11 // pred_check
          %p149 = pneg %p106
        $region14: #{tpu_custom_call.1} parent=11 // pred_check_branch
          %151 = sbr.rel (%p149) target = $region16
        $region15: #{tpu_custom_call.1} parent=11 // pred_region
          %s153 = ssub.s32 2048, 2048
          %154 = vsyncadd [#allocation6], %s153
          %s155 = sshll.u32 [#allocation7], 4
          %s156 = int_to_ptr.vmem [resolvable:$true] %s155
          %161 = dma.hbm_to_vmem [thread:$0]  %s2, 2048, %s156, [#allocation6], 128, 128, 8
        $region16: #{tpu_custom_call.1} parent=11 // pred_fallthru
          _
      $region12: #{tpu_custom_call.1} parent=5 // pred_fallthru
        _
      %p162 = scmp.lt.s32.totalorder %s15, 2
      // Predicated region
      $region17: #{tpu_custom_call.1} parent=5 // pred_check
        %p163 = pneg %p162
      $region18: #{tpu_custom_call.1} parent=5 // pred_check_branch
        %165 = sbr.rel (%p163) target = $region20
      $region19: #{tpu_custom_call.1} parent=5 // pred_region
        // Predicated region
        $region21: #{tpu_custom_call.1} parent=19 // pred_check
          %p166 = pneg %p49
        $region22: #{tpu_custom_call.1} parent=19 // pred_check_branch
          %168 = sbr.rel (%p166) target = $region24
        $region23: #{tpu_custom_call.1} parent=19 // pred_region
          %s169 = sand.u32 %s39, 1
          %s170 = scalar_lea.sflag [#allocation4], %s169
          %s171 = sand.u32 %s39, 1
          %s172 = smul.addr %s171, 8
          %s173 = scalar_lea.vmem [#allocation3], %s172
          %s174 = smul.u32 2, %s23
          %s176 = ssub.s32 128, 128
          %177 = vsyncadd %s170, %s176
          %s178 = smul.addr %s22, 4
          %s179 = sadd.s32 %s174, %s178
          %s180 = smul.addr %s179, 64
          %s181 = scalar_lea.hbm %s0, %s180
          %s182 = sshll.u32 %s173, 4
          %s183 = int_to_ptr.vmem [resolvable:$true] %s182
          %188 = dma.hbm_to_vmem [thread:$0]  %s181, 128, %s183, %s170, 64, 64, 4
        $region24: #{tpu_custom_call.1} parent=19 // pred_fallthru
          _
        // Predicated region
        $region25: #{tpu_custom_call.1} parent=19 // pred_check
          %p189 = pneg %p79
        $region26: #{tpu_custom_call.1} parent=19 // pred_check_branch
          %191 = sbr.rel (%p189) target = $region28
        $region27: #{tpu_custom_call.1} parent=19 // pred_region
          %s192 = sand.u32 %s15, 1
          %s193 = scalar_lea.sflag [#allocation6], %s192
          %s194 = sand.u32 %s69, 1
          %s195 = smul.addr %s194, 8
          %s196 = scalar_lea.vmem [#allocation5], %s195
          %s197 = sadd.s32 %s23, 1
          %s198 = smul.u32 2, %s197
          %s200 = ssub.s32 128, 128
          %201 = vsyncadd %s193, %s200
          %s202 = smul.addr %s22, 4
          %s203 = sadd.s32 %s198, %s202
          %s204 = smul.addr %s203, 64
          %s205 = scalar_lea.hbm %s1, %s204
          %s206 = sshll.u32 %s196, 4
          %s207 = int_to_ptr.vmem [resolvable:$true] %s206
          %212 = dma.hbm_to_vmem [thread:$0]  %s205, 128, %s207, %s193, 64, 64, 4
        $region28: #{tpu_custom_call.1} parent=19 // pred_fallthru
          _
      $region20: #{tpu_custom_call.1} parent=5 // pred_fallthru
        _
      %p213 = scmp.le.s32.totalorder 1, %s15
      %p214 = scmp.lt.s32.totalorder %s15, 3
      %p215 = pnand %p213, %p214
      %p216 = pneg %p215
      // Predicated region
      $region29: #{tpu_custom_call.1} parent=5 // pred_check
        _
      $region30: #{tpu_custom_call.1} parent=5 // pred_check_branch
        %218 = sbr.rel (%p215) target = $region32
      $region31: #{tpu_custom_call.1} parent=5 // pred_region
        %s219 = ssub.s32 %s15, 1
        %s220 = sand.u32 %s42, 1
        %s221 = scalar_lea.sflag [#allocation4], %s220
        %s222 = sand.u32 %s42, 1
        %s223 = smul.addr %s222, 8
        %s224 = scalar_lea.vmem [#allocation3], %s223
        // Predicated region
        $region33: #{tpu_custom_call.1} parent=31 // pred_check
          %p225 = pneg %p55
        $region34: #{tpu_custom_call.1} parent=31 // pred_check_branch
          %227 = sbr.rel (%p225) target = $region36
        $region35: #{tpu_custom_call.1} parent=31 // pred_region
          %228 = dma.done %s221, 128
        $region36: #{tpu_custom_call.1} parent=31 // pred_fallthru
          _
        %s229 = sand.u32 %s20, 1
        %s230 = scalar_lea.sflag [#allocation6], %s229
        %s231 = sand.u32 %s72, 1
        %s232 = smul.addr %s231, 8
        %s233 = scalar_lea.vmem [#allocation5], %s232
        // Predicated region
        $region37: #{tpu_custom_call.1} parent=31 // pred_check
          %p234 = pneg %p85
        $region38: #{tpu_custom_call.1} parent=31 // pred_check_branch
          %236 = sbr.rel (%p234) target = $region40
        $region39: #{tpu_custom_call.1} parent=31 // pred_region
          %237 = dma.done %s230, 128
        $region40: #{tpu_custom_call.1} parent=31 // pred_fallthru
          _
        // Predicated region
        $region41: #{tpu_custom_call.1} parent=31 // pred_check
          %p238 = pneg %p106
        $region42: #{tpu_custom_call.1} parent=31 // pred_check_branch
          %240 = sbr.rel (%p238) target = $region44
        $region43: #{tpu_custom_call.1} parent=31 // pred_region
          %241 = dma.done [#allocation6], 2048
        $region44: #{tpu_custom_call.1} parent=31 // pred_fallthru
          _
        %s242 = sand.u32 %s42, 1
        %s243 = scalar_lea.sflag [#allocation4], %s242
        %s244 = sand.u32 %s42, 1
        %s245 = smul.addr %s244, 8
        %s246 = scalar_lea.vmem [#allocation3], %s245
        %p247 = pneg %p55
        %p248 = pneg %p52
        %s249 = sand.u32 %s20, 1
        %s250 = scalar_lea.sflag [#allocation6], %s249
        %s251 = sand.u32 %s72, 1
        %s252 = smul.addr %s251, 8
        %s253 = scalar_lea.vmem [#allocation5], %s252
        %p254 = pneg %p85
        %p255 = pneg %p82
        %p256 = pneg %p106
        %p257 = pneg %p103
        %p258 = pneg %p134
        %p259 = pneg %p131
        %p260 = scmp.lt.s32.totalorder %s24, 1
        %s261 = scalar_select %p260, %s24, 1
        %p262 = scmp.lt.s32.totalorder %s25, 0
        %s263 = scalar_select %p262, %s25, 0
        %s264 = smul.addr %s261, 9
        %s265 = sadd.s32 %s263, %s264
        %s266 = smul.addr %s265, 8
        %s267 = scalar_lea.vmem %s3, %s266
        %s268 = smul.u32 2, %s25
        %s269 = sadd.s32 %s25, 1
        %s270 = smul.u32 2, %s269
        %p271 = scmp.lt.s32.totalorder %s24, 1
        %s272 = scalar_select %p271, %s24, 1
        %p273 = scmp.lt.s32.totalorder %s25, 0
        %s274 = scalar_select %p273, %s25, 0
        %s275 = smul.addr %s272, 9
        %s276 = sadd.s32 %s274, %s275
        %s277 = smul.addr %s276, 8
        %s278 = scalar_lea.vmem %s3, %s277
        %v280 = vld [vmem:[%s224] sm:$0xf]
        %v281 = vld [vmem:[%s224 + $0x4] sm:$0xf]
        %v284 = vunpack.c.l.b16 %v280
        %v285 = vunpack.c.l.b16 %v281
        %v286 = vpack.c.b16 %v285, %v284
        %vm288 = vcmask 523264
        %289 = vst.msk [vmem:[#allocation2] sm:$0xff] %vm288, %v286
        %v290 = vld [vmem:[%s233] sm:$0xf]
        %v291 = vld [vmem:[%s233 + $0x4] sm:$0xf]
        %v294 = vunpack.c.l.b16 %v290
        %v295 = vunpack.c.l.b16 %v291
        %v296 = vpack.c.b16 %v295, %v294
        %298 = vst.msk [vmem:[#allocation2 + $0x8] sm:$0xff] %vm288, %v296
        %v299 = vld [vmem:[#allocation7] sm:$0xff]
        %v300 = vld [vmem:[#allocation7 + $0x8] sm:$0xff]
        %v301 = vld [vmem:[#allocation7 + $0x10] sm:$0xff]
        %v302 = vld [vmem:[#allocation7 + $0x18] sm:$0xff]
        %v303 = vld [vmem:[#allocation7 + $0x20] sm:$0xff]
        %v304 = vld [vmem:[#allocation7 + $0x28] sm:$0xff]
        %v305 = vld [vmem:[#allocation7 + $0x30] sm:$0xff]
        %v306 = vld [vmem:[#allocation7 + $0x38] sm:$0xff]
        %v307 = vld [vmem:[#allocation2] sm:$0xff]
        %v308 = vld [vmem:[#allocation2 + $0x8] sm:$0x1]
        %s309 = scalar_lea.vmem [#allocation7], 64
        %v310 = vld [vmem:[%s309] sm:$0xff]
        %v311 = vld [vmem:[%s309 + $0x8] sm:$0xff]
        %v312 = vld [vmem:[%s309 + $0x10] sm:$0xff]
        %v313 = vld [vmem:[%s309 + $0x18] sm:$0xff]
        %v314 = vld [vmem:[%s309 + $0x20] sm:$0xff]
        %v315 = vld [vmem:[%s309 + $0x28] sm:$0xff]
        %v316 = vld [vmem:[%s309 + $0x30] sm:$0xff]
        %v317 = vld [vmem:[%s309 + $0x38] sm:$0xff]
        %vm318 = vsmask.f32 7424
        %v320 = vshrl.u32 %v307, 16
        %v322 = vshll.u32 %v307, 16
        %v324 = vrot.slane %v322, 1
        %v325 = vor.u32 %v320, %v324
        %v327 = vshll.u32 %v308, 16
        %v329 = vrot.slane %v327, 1
        %v330 = vsel %vm318, %v325, %v329
        %v339 = vunpack.c.l.b16 %v310
        %v340 = vunpack.c.h.b16 %v310
        %v341 = vunpack.c.l.b16 %v311
        %v342 = vunpack.c.h.b16 %v311
        %v343 = vunpack.c.l.b16 %v312
        %v344 = vunpack.c.h.b16 %v312
        %v345 = vunpack.c.l.b16 %v313
        %v346 = vunpack.c.h.b16 %v313
        %v347 = vunpack.c.l.b16 %v314
        %v348 = vunpack.c.h.b16 %v314
        %v349 = vunpack.c.l.b16 %v315
        %v350 = vunpack.c.h.b16 %v315
        %v351 = vunpack.c.l.b16 %v316
        %v352 = vunpack.c.h.b16 %v316
        %v353 = vunpack.c.l.b16 %v317
        %v354 = vunpack.c.h.b16 %v317
        %v355 = vpack.c.b16 %v341, %v339
        %v356 = vpack.c.b16 %v342, %v340
        %v357 = vpack.c.b16 %v345, %v343
        %v358 = vpack.c.b16 %v346, %v344
        %v359 = vpack.c.b16 %v349, %v347
        %v360 = vpack.c.b16 %v350, %v348
        %v361 = vpack.c.b16 %v353, %v351
        %v362 = vpack.c.b16 %v354, %v352
        %v372 = vsel %vm288, %v330, 0
        %374 = vmatprep.subr.bf16.mxu0 %v356
        %375 = vmatpush1.bf16.msra.mxu0 %v355
        %376 = vmatprep.subr.bf16.mxu0 %v358
        %377 = vmatpush1.bf16.msra.mxu0 %v357
        %378 = vmatprep.subr.bf16.mxu0 %v360
        %379 = vmatpush1.bf16.msra.mxu0 %v359
        %380 = vmatprep.subr.bf16.mxu0 %v362
        %381 = vmatpush1.bf16.msra.mxu0 %v361
        %382 = vmatprep.subr.bf16.mxu0 0
        %383 = vmatpush1.bf16.msra.mxu0 0
        %384 = vmatprep.subr.bf16.mxu0 0
        %385 = vmatpush1.bf16.msra.mxu0 0
        %386 = vmatprep.subr.bf16.mxu0 0
        %387 = vmatpush1.bf16.msra.mxu0 0
        %388 = vmatprep.subr.bf16.mxu0 0
        %389 = vmatpush1.bf16.msra.mxu0 0
        %390 = vmatprep.subr.bf16.mxu0 0
        %391 = vmatpush1.bf16.msra.mxu0 0
        %392 = vmatprep.subr.bf16.mxu0 0
        %393 = vmatpush1.bf16.msra.mxu0 0
        %394 = vmatprep.subr.bf16.mxu0 0
        %395 = vmatpush1.bf16.msra.mxu0 0
        %396 = vmatprep.subr.bf16.mxu0 0
        %397 = vmatpush1.bf16.msra.mxu0 0
        %398 = vmatprep.subr.bf16.mxu0 0
        %399 = vmatpush1.bf16.msra.mxu0 0
        %400 = vmatprep.subr.bf16.mxu0 0
        %401 = vmatpush1.bf16.msra.mxu0 0
        %402 = vmatprep.subr.bf16.mxu0 0
        %403 = vmatpush1.bf16.msra.mxu0 0
        %404 = vmatprep.subr.bf16.mxu0 0
        %405 = vmatpush1.bf16.msra.mxu0 0
        %406 = vmatprep.mubr.bf16.mxu0 0
        %407 = vmatmul.mubr.bf16.gmra.mrb[0].mxu0 %v372
        %v408 = vpop.f32.mrb[0].mxu0
        %v409 = vadd.f32 0.0, %v408
        %v410 = vpop.f32.mrb[0].mxu0
        %v411 = vadd.f32 0.0, %v410
        %v412 = vpop.f32.mrb[0].mxu0
        %v413 = vadd.f32 0.0, %v412
        %v414 = vpop.f32.mrb[0].mxu0
        %v415 = vadd.f32 0.0, %v414
        %416 = vdwg.mxu0
        %v425 = vunpack.c.l.b16 %v299
        %v426 = vunpack.c.h.b16 %v299
        %v427 = vunpack.c.l.b16 %v300
        %v428 = vunpack.c.h.b16 %v300
        %v429 = vunpack.c.l.b16 %v301
        %v430 = vunpack.c.h.b16 %v301
        %v431 = vunpack.c.l.b16 %v302
        %v432 = vunpack.c.h.b16 %v302
        %v433 = vunpack.c.l.b16 %v303
        %v434 = vunpack.c.h.b16 %v303
        %v435 = vunpack.c.l.b16 %v304
        %v436 = vunpack.c.h.b16 %v304
        %v437 = vunpack.c.l.b16 %v305
        %v438 = vunpack.c.h.b16 %v305
        %v439 = vunpack.c.l.b16 %v306
        %v440 = vunpack.c.h.b16 %v306
        %v441 = vpack.c.b16 %v427, %v425
        %v442 = vpack.c.b16 %v428, %v426
        %v443 = vpack.c.b16 %v431, %v429
        %v444 = vpack.c.b16 %v432, %v430
        %v445 = vpack.c.b16 %v435, %v433
        %v446 = vpack.c.b16 %v436, %v434
        %v447 = vpack.c.b16 %v439, %v437
        %v448 = vpack.c.b16 %v440, %v438
        %v458 = vsel %vm288, %v286, 0
        %460 = vmatprep.subr.bf16.mxu0 %v442
        %461 = vmatpush1.bf16.msra.mxu0 %v441
        %462 = vmatprep.subr.bf16.mxu0 %v444
        %463 = vmatpush1.bf16.msra.mxu0 %v443
        %464 = vmatprep.subr.bf16.mxu0 %v446
        %465 = vmatpush1.bf16.msra.mxu0 %v445
        %466 = vmatprep.subr.bf16.mxu0 %v448
        %467 = vmatpush1.bf16.msra.mxu0 %v447
        %468 = vmatprep.subr.bf16.mxu0 0
        %469 = vmatpush1.bf16.msra.mxu0 0
        %470 = vmatprep.subr.bf16.mxu0 0
        %471 = vmatpush1.bf16.msra.mxu0 0
        %472 = vmatprep.subr.bf16.mxu0 0
        %473 = vmatpush1.bf16.msra.mxu0 0
        %474 = vmatprep.subr.bf16.mxu0 0
        %475 = vmatpush1.bf16.msra.mxu0 0
        %476 = vmatprep.subr.bf16.mxu0 0
        %477 = vmatpush1.bf16.msra.mxu0 0
        %478 = vmatprep.subr.bf16.mxu0 0
        %479 = vmatpush1.bf16.msra.mxu0 0
        %480 = vmatprep.subr.bf16.mxu0 0
        %481 = vmatpush1.bf16.msra.mxu0 0
        %482 = vmatprep.subr.bf16.mxu0 0
        %483 = vmatpush1.bf16.msra.mxu0 0
        %484 = vmatprep.subr.bf16.mxu0 0
        %485 = vmatpush1.bf16.msra.mxu0 0
        %486 = vmatprep.subr.bf16.mxu0 0
        %487 = vmatpush1.bf16.msra.mxu0 0
        %488 = vmatprep.subr.bf16.mxu0 0
        %489 = vmatpush1.bf16.msra.mxu0 0
        %490 = vmatprep.subr.bf16.mxu0 0
        %491 = vmatpush1.bf16.msra.mxu0 0
        %492 = vmatprep.mubr.bf16.mxu0 0
        %493 = vmatmul.mubr.bf16.gmra.mrb[0].mxu0 %v458
        %v494 = vpop.f32.mrb[0].mxu0
        %v495 = vadd.f32 %v409, %v494
        %v496 = vpop.f32.mrb[0].mxu0
        %v497 = vadd.f32 %v411, %v496
        %v498 = vpop.f32.mrb[0].mxu0
        %v499 = vadd.f32 %v413, %v498
        %v500 = vpop.f32.mrb[0].mxu0
        %v501 = vadd.f32 %v415, %v500
        %502 = vdwg.mxu0
        %v503 = vmul.f32 %v495, %v495
        %v504 = vmul.f32 %v499, %v499
        %v505 = vmul.f32 %v497, %v497
        %v506 = vmul.f32 %v501, %v501
        %507 = vxpose.xlu0.b32.start [1/16] %v503, 128
        %508 = vxpose.xlu0.b32.cont [2/16] %v504, 128
        %509 = vxpose.xlu0.b32.cont [3/16] 0.0, 128
        %510 = vxpose.xlu0.b32.cont [4/16] 0.0, 128
        %511 = vxpose.xlu0.b32.cont [5/16] 0.0, 128
        %512 = vxpose.xlu0.b32.cont [6/16] 0.0, 128
        %513 = vxpose.xlu0.b32.cont [7/16] 0.0, 128
        %514 = vxpose.xlu0.b32.cont [8/16] 0.0, 128
        %515 = vxpose.xlu0.b32.cont [9/16] 0.0, 128
        %516 = vxpose.xlu0.b32.cont [10/16] 0.0, 128
        %517 = vxpose.xlu0.b32.cont [11/16] 0.0, 128
        %518 = vxpose.xlu0.b32.cont [12/16] 0.0, 128
        %519 = vxpose.xlu0.b32.cont [13/16] 0.0, 128
        %520 = vxpose.xlu0.b32.cont [14/16] 0.0, 128
        %521 = vxpose.xlu0.b32.cont [15/16] 0.0, 128
        %522 = vxpose.xlu0.b32.end [16/16] 0.0, 128
        %v523 = vpop.trf.xlu0
        %v524 = vpop.trf.xlu0
        %v525 = vpop.trf.xlu0
        %v526 = vpop.trf.xlu0
        %v527 = vpop.trf.xlu0
        %v528 = vpop.trf.xlu0
        %v529 = vpop.trf.xlu0
        %v530 = vpop.trf.xlu0
        %v531 = vpop.trf.xlu0
        %v532 = vpop.trf.xlu0
        %v533 = vpop.trf.xlu0
        %v534 = vpop.trf.xlu0
        %v535 = vpop.trf.xlu0
        %v536 = vpop.trf.xlu0
        %v537 = vpop.trf.xlu0
        %v538 = vpop.trf.xlu0
        %539 = vxpose.xlu0.b32.start [1/16] %v505, 128
        %540 = vxpose.xlu0.b32.cont [2/16] %v506, 128
        %541 = vxpose.xlu0.b32.cont [3/16] 0.0, 128
        %542 = vxpose.xlu0.b32.cont [4/16] 0.0, 128
        %543 = vxpose.xlu0.b32.cont [5/16] 0.0, 128
        %544 = vxpose.xlu0.b32.cont [6/16] 0.0, 128
        %545 = vxpose.xlu0.b32.cont [7/16] 0.0, 128
        %546 = vxpose.xlu0.b32.cont [8/16] 0.0, 128
        %547 = vxpose.xlu0.b32.cont [9/16] 0.0, 128
        %548 = vxpose.xlu0.b32.cont [10/16] 0.0, 128
        %549 = vxpose.xlu0.b32.cont [11/16] 0.0, 128
        %550 = vxpose.xlu0.b32.cont [12/16] 0.0, 128
        %551 = vxpose.xlu0.b32.cont [13/16] 0.0, 128
        %552 = vxpose.xlu0.b32.cont [14/16] 0.0, 128
        %553 = vxpose.xlu0.b32.cont [15/16] 0.0, 128
        %554 = vxpose.xlu0.b32.end [16/16] 0.0, 128
        %v555 = vpop.trf.xlu0
        %v556 = vpop.trf.xlu0
        %v557 = vpop.trf.xlu0
        %v558 = vpop.trf.xlu0
        %v559 = vpop.trf.xlu0
        %v560 = vpop.trf.xlu0
        %v561 = vpop.trf.xlu0
        %v562 = vpop.trf.xlu0
        %v563 = vpop.trf.xlu0
        %v564 = vpop.trf.xlu0
        %v565 = vpop.trf.xlu0
        %v566 = vpop.trf.xlu0
        %v567 = vpop.trf.xlu0
        %v568 = vpop.trf.xlu0
        %v569 = vpop.trf.xlu0
        %v570 = vpop.trf.xlu0
        %v571 = vadd.f32 %v523, %v555
        %v572 = vadd.f32 %v524, %v556
        %v573 = vadd.f32 %v525, %v557
        %v574 = vadd.f32 %v526, %v558
        %v575 = vadd.f32 %v527, %v559
        %v576 = vadd.f32 %v528, %v560
        %v577 = vadd.f32 %v529, %v561
        %v578 = vadd.f32 %v530, %v562
        %vm579 = vcmask 130048
        %580 = vst.msk [vmem:[%s278] sm:$0xff] %vm579, %v571
        %581 = vst.msk [vmem:[%s278 + $0x8] sm:$0xff] %vm579, %v572
        %582 = vst.msk [vmem:[%s278 + $0x10] sm:$0xff] %vm579, %v573
        %583 = vst.msk [vmem:[%s278 + $0x18] sm:$0xff] %vm579, %v574
        %584 = vst.msk [vmem:[%s278 + $0x20] sm:$0xff] %vm579, %v575
        %585 = vst.msk [vmem:[%s278 + $0x28] sm:$0xff] %vm579, %v576
        %586 = vst.msk [vmem:[%s278 + $0x30] sm:$0xff] %vm579, %v577
        %587 = vst.msk [vmem:[%s278 + $0x38] sm:$0xff] %vm579, %v578
        %vm588 = vcmask 122880
        %589 = vst.msk [vmem:[%s278] sm:$0x1] %vm588, %v523
        %590 = vst.msk [vmem:[%s278 + $0x40] sm:$0x1] %vm588, %v555
        %p591 = scmp.lt.s32.totalorder %s24, 1
        %s592 = scalar_select %p591, %s24, 1
        %p593 = scmp.lt.s32.totalorder %s25, 0
        %s594 = scalar_select %p593, %s25, 0
        %s595 = smul.addr %s592, 9
        %s596 = sadd.s32 %s594, %s595
        %s597 = smul.addr %s596, 8
        %s598 = scalar_lea.vmem %s3, %s597
        // Predicated region
        $region45: #{tpu_custom_call.1} parent=31 // pred_check
          %p599 = pneg %p131
        $region46: #{tpu_custom_call.1} parent=31 // pred_check_branch
          %601 = sbr.rel (%p599) target = $region48
        $region47: #{tpu_custom_call.1} parent=31 // pred_region
          _
        $region48: #{tpu_custom_call.1} parent=31 // pred_fallthru
          _
      $region32: #{tpu_custom_call.1} parent=5 // pred_fallthru
        _
      %p602 = scmp.le.s32.totalorder 2, %s15
      // Predicated region
      $region49: #{tpu_custom_call.1} parent=5 // pred_check
        %p603 = pneg %p602
      $region50: #{tpu_custom_call.1} parent=5 // pred_check_branch
        %605 = sbr.rel (%p603) target = $region52
      $region51: #{tpu_custom_call.1} parent=5 // pred_region
        %s606 = ssub.s32 %s15, 2
        // Predicated region
        $region53: #{tpu_custom_call.1} parent=51 // pred_check
          %p607 = pneg %p137
        $region54: #{tpu_custom_call.1} parent=51 // pred_check_branch
          %609 = sbr.rel (%p607) target = $region56
        $region55: #{tpu_custom_call.1} parent=51 // pred_region
          %p610 = scmp.lt.s32.totalorder %s26, 1
          %s611 = scalar_select %p610, %s26, 1
          %p612 = scmp.lt.s32.totalorder %s27, 0
          %s613 = scalar_select %p612, %s27, 0
          %s614 = smul.addr %s611, 9
          %s615 = sadd.s32 %s613, %s614
          %s616 = smul.addr %s615, 8
          %s617 = scalar_lea.vmem %s3, %s616
        $region56: #{tpu_custom_call.1} parent=51 // pred_fallthru
          _
      $region52: #{tpu_custom_call.1} parent=5 // pred_fallthru
        _
    $region6: #{tpu_custom_call.1} parent=1 // loop_footer
      %s19 = sadd.s32 1, %s15
    $region7: #{tpu_custom_call.1} parent=1 // loop_footer_branch
      %14 = sbr.rel target = $region3
    $region8: #{tpu_custom_call.1} parent=1 // loop_exit
      _
    %618 = vsyncpa [#allocation4], 1
    %s619 = scalar_lea.sflag [#allocation4], 1
    %620 = vsyncpa %s619, 1
    %621 = vsyncpa [#allocation6], 1
    %s622 = scalar_lea.sflag [#allocation6], 1
    %623 = vsyncpa %s622, 1

</llo_original>
